<compile_context>
chip_gen: v7x
topology: tpu7x:2x2x1
jax: 0.10.0
libtpu: 0.0.40
codegen_flags: <defaults>
</compile_context>

<pallas_src>
import functools

import jax
import jax.numpy as jnp
from jax import lax
from jax.experimental import pallas as pl
from jax.experimental.pallas import tpu as pltpu


def _round_up(x, m):
    return ((x + m - 1) // m) * m


def _decoder_kernel(x_ref, w_ref, b_ref, o_ref, *, num_classes):
    # logits = x @ W + b   (MXU matmul, f32 accumulation)
    logits = jnp.dot(
        x_ref[...], w_ref[...], preferred_element_type=jnp.float32
    ) + b_ref[...]                                            # [TB, C_pad]

    # Mask padded class lanes to -inf so they contribute nothing to max / sum(exp).
    lane = lax.broadcasted_iota(jnp.int32, logits.shape, 1)    # [TB, C_pad]
    logits = jnp.where(lane < num_classes, logits, -jnp.inf)

    # Numerically-stable log_softmax along the class axis (dim=1).
    m = jnp.max(logits, axis=1, keepdims=True)                 # [TB, 1]
    shifted = logits - m                                       # [TB, C_pad]
    lse = jnp.log(jnp.sum(jnp.exp(shifted), axis=1, keepdims=True))  # [TB, 1]
    o_ref[...] = (shifted - lse).astype(o_ref.dtype)


def face_attribute_decoder_single_task(x, mask, weight, bias):
    """x: [B, D] f32, weight: [D, C] (transposed vs. torch's [C, D]), bias: [C].

    Returns (log_softmax(x @ W + b, axis=1), mask)  -- mask is pass-through.
    """
    B, D = x.shape
    D2, C = weight.shape
    assert D == D2 and bias.shape == (C,)

    # --- lane-dense padding -------------------------------------------------
    C_PAD = 128                              # output lane width (C=10 -> 128)
    D_PAD = _round_up(max(D, 128), 128)      # contraction depth, multiple of 128
    TB = min(256, _round_up(B, 8))           # batch tile, multiple of 8 sublanes
    B_PAD = _round_up(B, TB)

    x_p = jnp.pad(x, ((0, B_PAD - B), (0, D_PAD - D)))
    w_p = jnp.pad(weight, ((0, D_PAD - D), (0, C_PAD - C)))
    b_p = jnp.pad(bias, (0, C_PAD - C)).reshape(1, C_PAD)

    grid = (B_PAD // TB,)

    cost = pl.CostEstimate(
        flops=2 * B_PAD * D_PAD * C_PAD + 5 * B_PAD * C_PAD,
        transcendentals=B_PAD * (C_PAD + 1),
        bytes_accessed=4 * (B_PAD * D_PAD + D_PAD * C_PAD + C_PAD + B_PAD * C_PAD),
    )

    out_padded = pl.pallas_call(
        functools.partial(_decoder_kernel, num_classes=C),
        out_shape=jax.ShapeDtypeStruct((B_PAD, C_PAD), jnp.float32),
        grid=grid,
        in_specs=[
            pl.BlockSpec((TB, D_PAD), lambda i: (i, 0)),     # x tile, pipelined
            pl.BlockSpec((D_PAD, C_PAD), lambda i: (0, 0)),  # weight, resident
            pl.BlockSpec((1, C_PAD), lambda i: (0, 0)),      # bias, resident
        ],
        out_specs=pl.BlockSpec((TB, C_PAD), lambda i: (i, 0)),
        compiler_params=pltpu.CompilerParams(
            dimension_semantics=("parallel",),
        ),
        cost_estimate=cost,
    )(x_p, w_p, b_p)

    # Slice padded batch rows / class lanes back off.
    out = out_padded[:B, :C]
    # mask is returned untouched, exactly as in the PyTorch module.
    return out, mask


if __name__ == "__main__":
    # Small shapes consistent with the module's forward (x: [batch, dim], 10 classes).
    B, D, C = 8, 32, 10

    key = jax.random.PRNGKey(0)
    kx, kw, kb, km = jax.random.split(key, 4)

    x = jax.random.normal(kx, (B, D), dtype=jnp.float32)
    mask = jax.random.normal(km, (B, C), dtype=jnp.float32)

    # Deterministic synthetic parameters (nn.Linear(dim, 10) shapes, stored [D, C]).
    bound = 1.0 / (D ** 0.5)
    weight = jax.random.uniform(kw, (D, C), minval=-bound, maxval=bound,
                                dtype=jnp.float32)
    bias = jax.random.uniform(kb, (C,), minval=-bound, maxval=bound,
                              dtype=jnp.float32)

    out, mask_out = face_attribute_decoder_single_task(x, mask, weight, bias)
    jax.block_until_ready(out)
    jax.block_until_ready(mask_out)

    # Sanity check against plain-JAX reference.
    ref = jax.nn.log_softmax(x @ weight + bias, axis=1)
    assert out.shape == (B, C)
    assert jnp.allclose(out, ref, atol=1e-5, rtol=1e-5), "mismatch vs reference"
    assert jnp.allclose(mask_out, mask), "mask must be pass-through"

    print("KERNEL_OK")
</pallas_src>

<mosaic_0001>
module attributes {stable_mosaic.version = 11 : i64} {
  func.func @_decoder_kernel(%arg0: i32, %arg1: memref<8x128xf32, #tpu.memory_space<vmem>>, %arg2: memref<128x128xf32, #tpu.memory_space<vmem>>, %arg3: memref<1x128xf32, #tpu.memory_space<vmem>>, %arg4: memref<8x128xf32, #tpu.memory_space<vmem>>) attributes {dimension_semantics = [#tpu.dimension_semantics<parallel>], iteration_bounds = array<i64: 1>, scalar_prefetch = 0 : i64, scratch_operands = 0 : i64, tpu.core_type = #tpu.core_type<tc>, window_params = [{transform_indices = @transform_0, window_bounds = array<i64: 8, 128>}, {pipeline_mode = #tpu.pipeline_mode<synchronous>, transform_indices = @transform_1, window_bounds = array<i64: 128, 128>}, {pipeline_mode = #tpu.pipeline_mode<synchronous>, transform_indices = @transform_2, window_bounds = array<i64: 1, 128>}, {transform_indices = @transform_3, window_bounds = array<i64: 8, 128>}]} {
    %c0 = arith.constant 0 : index
    %c0_0 = arith.constant 0 : index
    %0 = vector.load %arg1[%c0, %c0_0] : memref<8x128xf32, #tpu.memory_space<vmem>>, vector<8x128xf32>
    %c0_1 = arith.constant 0 : index
    %c0_2 = arith.constant 0 : index
    %1 = vector.load %arg2[%c0_1, %c0_2] : memref<128x128xf32, #tpu.memory_space<vmem>>, vector<128x128xf32>
    %cst = arith.constant dense<0.000000e+00> : vector<8x128xf32>
    %2 = tpu.matmul %0, %1, %cst {dimension_numbers = #tpu.dot_dimension_numbers<[1], [0], [0], [1], [0, 0, 1, 1], [], []>} : vector<8x128xf32>, vector<128x128xf32>, vector<8x128xf32> -> vector<8x128xf32>
    %c0_3 = arith.constant 0 : index
    %c0_4 = arith.constant 0 : index
    %3 = vector.load %arg3[%c0_3, %c0_4] : memref<1x128xf32, #tpu.memory_space<vmem>>, vector<1x128xf32>
    %4 = vector.broadcast %3 : vector<1x128xf32> to vector<8x128xf32>
    %5 = arith.addf %2, %4 : vector<8x128xf32>
    %6 = tpu.iota {dimensions = array<i32: 1>} : vector<8x128xi32>
    %c10_i32 = arith.constant 10 : i32
    %7 = vector.broadcast %c10_i32 : i32 to vector<8x128xi32>
    %8 = arith.cmpi slt, %6, %7 : vector<8x128xi32>
    %cst_5 = arith.constant 0xFF800000 : f32
    %9 = vector.broadcast %cst_5 : f32 to vector<8x128xf32>
    %10 = arith.select %8, %5, %9 : vector<8x128xi1>, vector<8x128xf32>
    %cst_6 = arith.constant dense<0xFF800000> : vector<8xf32>
    %11 = vector.multi_reduction <maximumf>, %10, %cst_6 [1] : vector<8x128xf32> to vector<8xf32>
    %12 = vector.shape_cast %11 : vector<8xf32> to vector<8x1xf32>
    %13 = vector.broadcast %12 : vector<8x1xf32> to vector<8x128xf32>
    %14 = arith.subf %10, %13 : vector<8x128xf32>
    %15 = math.exp %14 : vector<8x128xf32>
    %cst_7 = arith.constant dense<0.000000e+00> : vector<8xf32>
    %16 = vector.multi_reduction <add>, %15, %cst_7 [1] : vector<8x128xf32> to vector<8xf32>
    %17 = vector.shape_cast %16 : vector<8xf32> to vector<8x1xf32>
    %18 = math.log %17 : vector<8x1xf32>
    %19 = vector.broadcast %18 : vector<8x1xf32> to vector<8x128xf32>
    %20 = arith.subf %14, %19 : vector<8x128xf32>
    %c0_8 = arith.constant 0 : index
    %c0_9 = arith.constant 0 : index
    %21 = vector.load %arg4[%c0_8, %c0_9] : memref<8x128xf32, #tpu.memory_space<vmem>>, vector<8x128xf32>
    tpu.vector_store %arg4[%c0_8, %c0_9], %20 {strides = array<i32>} : memref<8x128xf32, #tpu.memory_space<vmem>>, vector<8x128xf32>,
    return
  }
  func.func @transform_0(%arg0: i32) -> (i32, i32) {
    %c0_i32 = arith.constant 0 : i32
    %c0_i32_0 = arith.constant 0 : i32
    return %arg0, %c0_i32 : i32, i32
  }
  func.func @transform_1(%arg0: i32) -> (i32, i32) {
    %c0_i32 = arith.constant 0 : i32
    %c0_i32_0 = arith.constant 0 : i32
    %c0_i32_1 = arith.constant 0 : i32
    return %c0_i32, %c0_i32_0 : i32, i32
  }
  func.func @transform_2(%arg0: i32) -> (i32, i32) {
    %c0_i32 = arith.constant 0 : i32
    %c0_i32_0 = arith.constant 0 : i32
    %c0_i32_1 = arith.constant 0 : i32
    return %c0_i32, %c0_i32_0 : i32, i32
  }
  func.func @transform_3(%arg0: i32) -> (i32, i32) {
    %c0_i32 = arith.constant 0 : i32
    %c0_i32_0 = arith.constant 0 : i32
    return %arg0, %c0_i32 : i32, i32
  }
}

</mosaic_0001>

<llo_original>
// kernel: tpu_custom_call.1
$region0: #{tpu_custom_call.1}
  #allocation0 [shape = 'u32[]', space=smem, size = 0x4, offset = 0x4, fixed_abs, tag = 'smem constant byte address 0x4 - core index']
  #allocation1 [shape = 'u32[144,128]{1,0:T(1,128)}', space=vmem, size = 0x12000, scoped, tag = 'internal scratch']
  %s0 = inlined_call_operand.hbm [shape: f32[8,128], index: 0, kind: input, shape index: {}]
  %s1 = inlined_call_operand.hbm [shape: f32[128,128], index: 1, kind: input, shape index: {}]
  %s2 = inlined_call_operand.vmem [shape: f32[1,128], index: 2, kind: input, shape index: {}]
  %s3 = inlined_call_operand.hbm [shape: f32[8,128], index: 3, kind: output, shape index: {}]
  %s4 = sld [smem:[#allocation0]]
  $region30: #{tpu_custom_call.1} parent=0
    _
  %s6 = ssub.s32 1, %s4
  %s7 = scalar_select 0, %s6, %s4
  $region1: #{tpu_custom_call.1} parent=0
    #allocation2 [shape = 'u8[4096]{0}', space=vmem, size = 0x1000, scoped, tag = 'input window, operand 0, single buffered']
    #allocation3 [shape = 's32[1]{0}', space=sflag, size = 0x4, scoped, tag = 'scoped memory for tpu_custom_call.1']
    #allocation4 [shape = 's32[1]{0}', space=sflag, size = 0x4, scoped, tag = 'scoped memory for tpu_custom_call.1']
    #allocation5 [shape = 'u8[65536]{0}', space=vmem, size = 0x10000, scoped, tag = 'input window, operand 1, single buffered']
    #allocation6 [shape = 's32[1]{0}', space=sflag, size = 0x4, scoped, tag = 'scoped memory for tpu_custom_call.1']
    #allocation7 [shape = 'u8[4096]{0}', space=vmem, size = 0x1000, scoped, tag = 'output window, operand 0, single buffered']
    %8 = vsyncpa [#allocation3], 0
    %9 = vsyncpa [#allocation6], 0
    %10 = vsyncpa [#allocation4], 0
    // Predicated region
    $region2: #{tpu_custom_call.1} parent=1 // pred_check
      _
    $region3: #{tpu_custom_call.1} parent=1 // pred_check_branch
      %12 = sbr.rel (0) target = $region5
    $region4: #{tpu_custom_call.1} parent=1 // pred_region
      %s14 = ssub.s32 128, 128
      %15 = vsyncadd [#allocation3], %s14
      %s17 = sshll.u32 [#allocation2], 4
      %s18 = int_to_ptr.vmem [resolvable:$true] %s17
      %20 = dma.hbm_to_vmem [thread:$0]  %s0, 128, %s18, [#allocation3]
    $region5: #{tpu_custom_call.1} parent=1 // pred_fallthru
      _
    // Predicated region
    $region6: #{tpu_custom_call.1} parent=1 // pred_check
      _
    $region7: #{tpu_custom_call.1} parent=1 // pred_check_branch
      %22 = sbr.rel (0) target = $region9
    $region8: #{tpu_custom_call.1} parent=1 // pred_region
      %s24 = ssub.s32 2048, 2048
      %25 = vsyncadd [#allocation6], %s24
      %s26 = sshll.u32 [#allocation5], 4
      %s27 = int_to_ptr.vmem [resolvable:$true] %s26
      %32 = dma.hbm_to_vmem [thread:$0]  %s1, 2048, %s27, [#allocation6], 128, 128, 8
    $region9: #{tpu_custom_call.1} parent=1 // pred_fallthru
      _
    // Predicated region
    $region10: #{tpu_custom_call.1} parent=1 // pred_check
      _
    $region11: #{tpu_custom_call.1} parent=1 // pred_check_branch
      %34 = sbr.rel (0) target = $region13
    $region12: #{tpu_custom_call.1} parent=1 // pred_region
      _
    $region13: #{tpu_custom_call.1} parent=1 // pred_fallthru
      _
    // Predicated region
    $region14: #{tpu_custom_call.1} parent=1 // pred_check
      _
    $region15: #{tpu_custom_call.1} parent=1 // pred_check_branch
      %36 = sbr.rel (0) target = $region17
    $region16: #{tpu_custom_call.1} parent=1 // pred_region
      %37 = dma.done [#allocation3], 128
    $region17: #{tpu_custom_call.1} parent=1 // pred_fallthru
      _
    // Predicated region
    $region18: #{tpu_custom_call.1} parent=1 // pred_check
      _
    $region19: #{tpu_custom_call.1} parent=1 // pred_check_branch
      %39 = sbr.rel (0) target = $region21
    $region20: #{tpu_custom_call.1} parent=1 // pred_region
      %40 = dma.done [#allocation6], 2048
    $region21: #{tpu_custom_call.1} parent=1 // pred_fallthru
      _
    %v41 = vld [vmem:[#allocation2] sm:$0xff]
    %v42 = vld [vmem:[#allocation5] sm:$0xff]
    %v43 = vld [vmem:[#allocation5 + $0x8] sm:$0xff]
    %v44 = vld [vmem:[#allocation5 + $0x10] sm:$0xff]
    %v45 = vld [vmem:[#allocation5 + $0x18] sm:$0xff]
    %v46 = vld [vmem:[#allocation5 + $0x20] sm:$0xff]
    %v47 = vld [vmem:[#allocation5 + $0x28] sm:$0xff]
    %v48 = vld [vmem:[#allocation5 + $0x30] sm:$0xff]
    %v49 = vld [vmem:[#allocation5 + $0x38] sm:$0xff]
    %v50 = vld [vmem:[#allocation5 + $0x40] sm:$0xff]
    %v51 = vld [vmem:[#allocation5 + $0x48] sm:$0xff]
    %v52 = vld [vmem:[#allocation5 + $0x50] sm:$0xff]
    %v53 = vld [vmem:[#allocation5 + $0x58] sm:$0xff]
    %v54 = vld [vmem:[#allocation5 + $0x60] sm:$0xff]
    %v55 = vld [vmem:[#allocation5 + $0x68] sm:$0xff]
    %v56 = vld [vmem:[#allocation5 + $0x70] sm:$0xff]
    %v57 = vld [vmem:[#allocation5 + $0x78] sm:$0xff]
    %v58 = vld [vmem:[%s2] sm:$0x1]
    %v60 = vlaneseq
    %v61 = vshrl.u32 %v60, 7
    %v62 = vsub.s32 0, %v61
    %v63 = vrot.slane %v58, %v62
    %65 = vmatprep.subr.mxu0 0.0
    %66 = vmatpush1.msra.mxu0 %v42
    %67 = vmatprep.subr.mxu0 0.0
    %68 = vmatpush1.msra.mxu0 %v43
    %69 = vmatprep.subr.mxu0 0.0
    %70 = vmatpush1.msra.mxu0 %v44
    %71 = vmatprep.subr.mxu0 0.0
    %72 = vmatpush1.msra.mxu0 %v45
    %73 = vmatprep.subr.mxu0 0.0
    %74 = vmatpush1.msra.mxu0 %v46
    %75 = vmatprep.subr.mxu0 0.0
    %76 = vmatpush1.msra.mxu0 %v47
    %77 = vmatprep.subr.mxu0 0.0
    %78 = vmatpush1.msra.mxu0 %v48
    %79 = vmatprep.subr.mxu0 0.0
    %80 = vmatpush1.msra.mxu0 %v49
    %81 = vmatprep.subr.mxu0 0.0
    %82 = vmatpush1.msra.mxu0 %v50
    %83 = vmatprep.subr.mxu0 0.0
    %84 = vmatpush1.msra.mxu0 %v51
    %85 = vmatprep.subr.mxu0 0.0
    %86 = vmatpush1.msra.mxu0 %v52
    %87 = vmatprep.subr.mxu0 0.0
    %88 = vmatpush1.msra.mxu0 %v53
    %89 = vmatprep.subr.mxu0 0.0
    %90 = vmatpush1.msra.mxu0 %v54
    %91 = vmatprep.subr.mxu0 0.0
    %92 = vmatpush1.msra.mxu0 %v55
    %93 = vmatprep.subr.mxu0 0.0
    %94 = vmatpush1.msra.mxu0 %v56
    %95 = vmatprep.subr.mxu0 0.0
    %96 = vmatpush1.msra.mxu0 %v57
    %97 = vmatprep.subr.mxu0 0.0
    %98 = vmatpush1.msra.mxu0 0.0
    %99 = vmatprep.subr.mxu0 0.0
    %100 = vmatpush1.msra.mxu0 0.0
    %101 = vmatprep.subr.mxu0 0.0
    %102 = vmatpush1.msra.mxu0 0.0
    %103 = vmatprep.subr.mxu0 0.0
    %104 = vmatpush1.msra.mxu0 0.0
    %105 = vmatprep.subr.mxu0 0.0
    %106 = vmatpush1.msra.mxu0 0.0
    %107 = vmatprep.subr.mxu0 0.0
    %108 = vmatpush1.msra.mxu0 0.0
    %109 = vmatprep.subr.mxu0 0.0
    %110 = vmatpush1.msra.mxu0 0.0
    %111 = vmatprep.subr.mxu0 0.0
    %112 = vmatpush1.msra.mxu0 0.0
    %113 = vmatprep.subr.mxu0 0.0
    %114 = vmatpush1.msra.mxu0 0.0
    %115 = vmatprep.subr.mxu0 0.0
    %116 = vmatpush1.msra.mxu0 0.0
    %117 = vmatprep.subr.mxu0 0.0
    %118 = vmatpush1.msra.mxu0 0.0
    %119 = vmatprep.subr.mxu0 0.0
    %120 = vmatpush1.msra.mxu0 0.0
    %121 = vmatprep.subr.mxu0 0.0
    %122 = vmatpush1.msra.mxu0 0.0
    %123 = vmatprep.subr.mxu0 0.0
    %124 = vmatpush1.msra.mxu0 0.0
    %125 = vmatprep.subr.mxu0 0.0
    %126 = vmatpush1.msra.mxu0 0.0
    %127 = vmatprep.subr.mxu0 0.0
    %128 = vmatpush1.msra.mxu0 0.0
    %129 = vmatprep.mubr.f32.mxu0 0.0
    %130 = vmatmul.mubr.f32.gmra.mrb[0].mxu0 %v41
    %v131 = vpop.f32.mrb[0].mxu0
    %v132 = vadd.f32 %v63, %v131
    %v133 = vpop.f32.mrb[0].mxu0
    %134 = vdwg.mxu0
    %v135 = vlaneseq
    %v136 = vand.u32 %v135, 127
    %vm137 = vcmp.lt.s32.totalorder %v136, 10
    %v138 = vsel %vm137, %v132, -inf
    %139 = vmax.xlane.f32.xlu0 %v138
    %v140 = vpop.xlane.xlu0 %139
    %v141 = vsub.f32 %v138, %v140
    %v142 = vmul.f32 %v141, 1.442695
    %v143 = vpow.pop %v142
    %144 = vadd.xlane.f32.xlu0 %v143
    %v145 = vpop.xlane.xlu0 %144
    %v146 = vlog2.pop %v145
    %v147 = vmul.f32 %v146, 0.6931472
    %v148 = vsub.f32 %v141, %v147
    %149 = vst [vmem:[#allocation7] sm:$0xff] %v148
    // Predicated region
    $region22: #{tpu_custom_call.1} parent=1 // pred_check
      _
    $region23: #{tpu_custom_call.1} parent=1 // pred_check_branch
      %151 = sbr.rel (0) target = $region25
    $region24: #{tpu_custom_call.1} parent=1 // pred_region
      %s153 = ssub.s32 128, 128
      %154 = vsyncadd [#allocation4], %s153
      %s156 = sshll.u32 [#allocation7], 4
      %s157 = int_to_ptr.vmem [resolvable:$true] %s156
      %159 = dma.vmem_to_hbm [thread:$0]  %s157, 128, %s3, [#allocation4]
    $region25: #{tpu_custom_call.1} parent=1 // pred_fallthru
      _
    // Predicated region
    $region26: #{tpu_custom_call.1} parent=1 // pred_check
      _
    $region27: #{tpu_custom_call.1} parent=1 // pred_check_branch
      %161 = sbr.rel (0) target = $region29
    $region28: #{tpu_custom_call.1} parent=1 // pred_region
      %162 = dma.done [#allocation4], 128
    $region29: #{tpu_custom_call.1} parent=1 // pred_fallthru
      _
    %163 = vsyncpa [#allocation3], 1
    %164 = vsyncpa [#allocation6], 1
    %165 = vsyncpa [#allocation4], 1

</llo_original>
